<compile_context>
chip_gen: v6e
topology: v6e:2x2x1
jax: 0.10.0
libtpu: 0.0.40
codegen_flags: <defaults>
</compile_context>

<pallas_src>
import functools

import jax
import jax.numpy as jnp
from jax import lax
from jax.experimental import pallas as pl
from jax.experimental.pallas import tpu as pltpu


def _focal_loss_kernel(logits_ref, labels_ref, sum_ref, cnt_ref, *,
                       gamma, total_rows):
    i = pl.program_id(0)

    x = logits_ref[...].astype(jnp.float32)            # (tm, C)
    lab = labels_ref[...]                               # (tm, 1) int32
    tm, c = x.shape

    # Row / label validity: out-of-range tail rows and ignored labels -> 0.
    row_id = i * tm + lax.broadcasted_iota(jnp.int32, (tm, 1), 0)
    valid = (row_id < total_rows) & (lab >= 0) & (lab < c)          # (tm, 1)

    # Numerically-stable log-softmax pieces (per row).
    m = jnp.max(x, axis=-1, keepdims=True)                          # (tm, 1)
    sum_exp = jnp.sum(jnp.exp(x - m), axis=-1, keepdims=True)       # (tm, 1)
    lse = jnp.log(sum_exp) + m                                      # (tm, 1)

    # Gather the labeled-class logit with a one-hot select (no dynamic gather).
    cls = lax.broadcasted_iota(jnp.int32, (tm, c), 1)
    picked = jnp.sum(jnp.where(cls == lab, x, 0.0), axis=-1, keepdims=True)

    logp_y = picked - lse                                           # log p[y]
    p_y = jnp.exp(logp_y)                                           # p[y]
    base = jnp.maximum(1.0 - p_y, 0.0)                              # clamp fp slop
    if float(gamma) == 2.0:
        factor = base * base                                        # VPU, not EUP pow
    elif float(gamma) == int(gamma) and gamma >= 0:
        factor = lax.integer_pow(base, int(gamma))
    else:
        factor = jnp.power(base, jnp.float32(gamma))
    per_row = jnp.where(valid, factor * logp_y, 0.0)                # (tm, 1)

    # Per-tile partials (block index i of the (num_tiles, 1, 1) outputs).
    sum_ref[0] = jnp.sum(per_row, axis=0, keepdims=True)            # (1, 1)
    cnt_ref[0] = jnp.sum(valid.astype(jnp.float32), axis=0, keepdims=True)


def _pick_row_tile(rows, c, *, vmem_budget_bytes=24 << 20, max_tm=1024):
    """Largest multiple-of-8 row tile fitting the VMEM budget (all chips)."""
    # Double-buffered f32 logits tile (tm, C) + int32 labels tile, which pads
    # to (tm, 128) lanes in VMEM.
    per_row_bytes = 2 * 4 * (c + 128)
    tm = min(max_tm, vmem_budget_bytes // per_row_bytes)
    tm = max(8, (tm // 8) * 8)
    rows_pad8 = ((rows + 7) // 8) * 8
    return min(tm, rows_pad8)


def softmax_focal_loss(logits, labels, gamma=2.0, tm=None):
    """logits: (..., C) float (f32 or bf16); labels: (...) int.  Scalar f32."""
    c = logits.shape[-1]
    rows = 1
    for d in logits.shape[:-1]:
        rows *= int(d)
    x = logits.reshape(rows, c)
    y = labels.reshape(rows, 1).astype(jnp.int32)

    if tm is None:
        tm = _pick_row_tile(rows, c)
    num_tiles = pl.cdiv(rows, tm)

    kernel = functools.partial(_focal_loss_kernel, gamma=gamma, total_rows=rows)
    psum, pcnt = pl.pallas_call(
        kernel,
        out_shape=(
            jax.ShapeDtypeStruct((num_tiles, 1, 1), jnp.float32),
            jax.ShapeDtypeStruct((num_tiles, 1, 1), jnp.float32),
        ),
        grid=(num_tiles,),
        in_specs=[
            pl.BlockSpec((tm, c), lambda i: (i, 0)),
            pl.BlockSpec((tm, 1), lambda i: (i, 0)),
        ],
        out_specs=(
            pl.BlockSpec((1, 1, 1), lambda i: (i, 0, 0)),
            pl.BlockSpec((1, 1, 1), lambda i: (i, 0, 0)),
        ),
        compiler_params=pltpu.CompilerParams(
            dimension_semantics=("parallel",),
            vmem_limit_bytes=32 * 1024 * 1024,
        ),
    )(x, y)
    # TODO(synk): for vocab-scale C add a second grid axis over classes with an
    # online logsumexp so huge C doesn't force tiny row tiles.
    return -(jnp.sum(psum) / jnp.sum(pcnt))


def _reference(logits, labels, gamma=2.0):
    c = logits.shape[-1]
    logp = jax.nn.log_softmax(logits.astype(jnp.float32), axis=-1)
    p = jnp.exp(logp)
    focal = (jnp.maximum(1.0 - p, 0.0) ** gamma) * logp
    valid = (labels >= 0) & (labels < c)
    safe = jnp.where(valid, labels, 0).astype(jnp.int32)
    picked = jnp.take_along_axis(focal, safe[..., None], axis=-1)[..., 0]
    picked = jnp.where(valid, picked, 0.0)
    return -(jnp.sum(picked) / jnp.sum(valid.astype(jnp.float32)))


if __name__ == "__main__":
    key = jax.random.PRNGKey(0)
    k1, k2, k3, k4 = jax.random.split(key, 4)

    # 1) Detector-style shapes (N, L, C), all labels valid -> plain mean.
    N, L, C = 2, 8, 128
    logits = jax.random.normal(k1, (N, L, C), dtype=jnp.float32)
    labels = jax.random.randint(k2, (N, L), 0, C, dtype=jnp.int32)
    loss = jax.block_until_ready(softmax_focal_loss(logits, labels, gamma=2.0))
    ref = _reference(logits, labels, gamma=2.0)
    assert jnp.allclose(loss, ref, atol=1e-5, rtol=1e-5), (loss, ref)

    # 2) bf16 logits in HBM (kernel upcasts to f32 internally).
    loss_bf16 = jax.block_until_ready(
        softmax_focal_loss(logits.astype(jnp.bfloat16), labels, gamma=2.0))
    ref_bf16 = _reference(logits.astype(jnp.bfloat16), labels, gamma=2.0)
    assert jnp.allclose(loss_bf16, ref_bf16, atol=1e-4, rtol=1e-4), (loss_bf16, ref_bf16)

    # 3) Ragged row count, C not a multiple of 128, ignored labels (-100).
    N2, L2, C2 = 3, 37, 200
    logits2 = jax.random.normal(k3, (N2, L2, C2), dtype=jnp.float32)
    labels2 = jax.random.randint(k4, (N2, L2), 0, C2, dtype=jnp.int32)
    labels2 = jnp.where((jnp.arange(N2 * L2).reshape(N2, L2) % 7) == 0,
                        -100, labels2)
    loss2 = jax.block_until_ready(
        softmax_focal_loss(logits2, labels2, gamma=2.0, tm=64))
    ref2 = _reference(logits2, labels2, gamma=2.0)
    assert jnp.allclose(loss2, ref2, atol=1e-5, rtol=1e-5), (loss2, ref2)

    print("KERNEL_OK")
</pallas_src>

<mosaic_0001>
module attributes {stable_mosaic.version = 11 : i64} {
  func.func @_focal_loss_kernel(%arg0: i32, %arg1: memref<16x128xf32, #tpu.memory_space<vmem>>, %arg2: memref<16x1xi32, #tpu.memory_space<vmem>>, %arg3: memref<1x1x1xf32, #tpu.memory_space<vmem>>, %arg4: memref<1x1x1xf32, #tpu.memory_space<vmem>>) attributes {dimension_semantics = [#tpu.dimension_semantics<parallel>], iteration_bounds = array<i64: 1>, scalar_prefetch = 0 : i64, scratch_operands = 0 : i64, tpu.core_type = #tpu.core_type<tc>, window_params = [{transform_indices = @transform_0, window_bounds = array<i64: 16, 128>}, {transform_indices = @transform_1, window_bounds = array<i64: 16, 1>}, {transform_indices = @transform_2, window_bounds = array<i64: 1, 1, 1>}, {transform_indices = @transform_3, window_bounds = array<i64: 1, 1, 1>}]} {
    %c0 = arith.constant 0 : index
    %c0_0 = arith.constant 0 : index
    %0 = vector.load %arg1[%c0, %c0_0] : memref<16x128xf32, #tpu.memory_space<vmem>>, vector<16x128xf32>
    %c0_1 = arith.constant 0 : index
    %c0_2 = arith.constant 0 : index
    %1 = vector.load %arg2[%c0_1, %c0_2] : memref<16x1xi32, #tpu.memory_space<vmem>>, vector<16x1xi32>
    %c16_i32 = arith.constant 16 : i32
    %2 = arith.muli %arg0, %c16_i32 : i32
    %3 = tpu.iota {dimensions = array<i32: 0>} : vector<16x1xi32>
    %4 = vector.broadcast %2 : i32 to vector<16x1xi32>
    %5 = arith.addi %4, %3 : vector<16x1xi32>
    %c16_i32_3 = arith.constant 16 : i32
    %6 = vector.broadcast %c16_i32_3 : i32 to vector<16x1xi32>
    %7 = arith.cmpi slt, %5, %6 : vector<16x1xi32>
    %c0_i32 = arith.constant 0 : i32
    %8 = vector.broadcast %c0_i32 : i32 to vector<16x1xi32>
    %9 = arith.cmpi sge, %1, %8 : vector<16x1xi32>
    %10 = arith.andi %7, %9 : vector<16x1xi1>
    %c128_i32 = arith.constant 128 : i32
    %11 = vector.broadcast %c128_i32 : i32 to vector<16x1xi32>
    %12 = arith.cmpi slt, %1, %11 : vector<16x1xi32>
    %13 = arith.andi %10, %12 : vector<16x1xi1>
    %cst = arith.constant dense<0xFF800000> : vector<16xf32>
    %14 = vector.multi_reduction <maximumf>, %0, %cst [1] : vector<16x128xf32> to vector<16xf32>
    %15 = vector.shape_cast %14 : vector<16xf32> to vector<16x1xf32>
    %16 = vector.broadcast %15 : vector<16x1xf32> to vector<16x128xf32>
    %17 = arith.subf %0, %16 : vector<16x128xf32>
    %18 = math.exp %17 : vector<16x128xf32>
    %cst_4 = arith.constant dense<0.000000e+00> : vector<16xf32>
    %19 = vector.multi_reduction <add>, %18, %cst_4 [1] : vector<16x128xf32> to vector<16xf32>
    %20 = vector.shape_cast %19 : vector<16xf32> to vector<16x1xf32>
    %21 = math.log %20 : vector<16x1xf32>
    %22 = arith.addf %21, %15 : vector<16x1xf32>
    %23 = tpu.iota {dimensions = array<i32: 1>} : vector<16x128xi32>
    %24 = vector.broadcast %1 : vector<16x1xi32> to vector<16x128xi32>
    %25 = arith.cmpi eq, %23, %24 : vector<16x128xi32>
    %cst_5 = arith.constant 0.000000e+00 : f32
    %26 = vector.broadcast %cst_5 : f32 to vector<16x128xf32>
    %27 = arith.select %25, %0, %26 : vector<16x128xi1>, vector<16x128xf32>
    %cst_6 = arith.constant dense<0.000000e+00> : vector<16xf32>
    %28 = vector.multi_reduction <add>, %27, %cst_6 [1] : vector<16x128xf32> to vector<16xf32>
    %29 = vector.shape_cast %28 : vector<16xf32> to vector<16x1xf32>
    %30 = arith.subf %29, %22 : vector<16x1xf32>
    %31 = math.exp %30 : vector<16x1xf32>
    %cst_7 = arith.constant 1.000000e+00 : f32
    %32 = vector.broadcast %cst_7 : f32 to vector<16x1xf32>
    %33 = arith.subf %32, %31 : vector<16x1xf32>
    %cst_8 = arith.constant 0.000000e+00 : f32
    %34 = vector.broadcast %cst_8 : f32 to vector<16x1xf32>
    %35 = arith.maximumf %33, %34 : vector<16x1xf32>
    %36 = arith.mulf %35, %35 : vector<16x1xf32>
    %37 = arith.mulf %36, %30 : vector<16x1xf32>
    %cst_9 = arith.constant 0.000000e+00 : f32
    %38 = vector.broadcast %cst_9 : f32 to vector<16x1xf32>
    %39 = arith.select %13, %37, %38 : vector<16x1xi1>, vector<16x1xf32>
    %cst_10 = arith.constant dense<0.000000e+00> : vector<1xf32>
    %40 = vector.multi_reduction <add>, %39, %cst_10 [0] : vector<16x1xf32> to vector<1xf32>
    %41 = vector.shape_cast %40 : vector<1xf32> to vector<1x1xf32>
    %c0_11 = arith.constant 0 : index
    %c0_12 = arith.constant 0 : index
    %c0_13 = arith.constant 0 : index
    %42 = vector.load %arg3[%c0_11, %c0_12, %c0_13] : memref<1x1x1xf32, #tpu.memory_space<vmem>>, vector<1x1x1xf32>
    %43 = vector.shape_cast %42 : vector<1x1x1xf32> to vector<1x1xf32>
    %44 = vector.shape_cast %41 : vector<1x1xf32> to vector<1x1x1xf32>
    tpu.vector_store %arg3[%c0_11, %c0_12, %c0_13], %44 {strides = array<i32>} : memref<1x1x1xf32, #tpu.memory_space<vmem>>, vector<1x1x1xf32>,
    %45 = arith.extui %13 : vector<16x1xi1> to vector<16x1xi32>
    %46 = arith.sitofp %45 : vector<16x1xi32> to vector<16x1xf32>
    %cst_14 = arith.constant dense<0.000000e+00> : vector<1xf32>
    %47 = vector.multi_reduction <add>, %46, %cst_14 [0] : vector<16x1xf32> to vector<1xf32>
    %48 = vector.shape_cast %47 : vector<1xf32> to vector<1x1xf32>
    %c0_15 = arith.constant 0 : index
    %c0_16 = arith.constant 0 : index
    %c0_17 = arith.constant 0 : index
    %49 = vector.load %arg4[%c0_15, %c0_16, %c0_17] : memref<1x1x1xf32, #tpu.memory_space<vmem>>, vector<1x1x1xf32>
    %50 = vector.shape_cast %49 : vector<1x1x1xf32> to vector<1x1xf32>
    %51 = vector.shape_cast %48 : vector<1x1xf32> to vector<1x1x1xf32>
    tpu.vector_store %arg4[%c0_15, %c0_16, %c0_17], %51 {strides = array<i32>} : memref<1x1x1xf32, #tpu.memory_space<vmem>>, vector<1x1x1xf32>,
    return
  }
  func.func @transform_0(%arg0: i32) -> (i32, i32) {
    %c0_i32 = arith.constant 0 : i32
    %c0_i32_0 = arith.constant 0 : i32
    return %arg0, %c0_i32 : i32, i32
  }
  func.func @transform_1(%arg0: i32) -> (i32, i32) {
    %c0_i32 = arith.constant 0 : i32
    %c0_i32_0 = arith.constant 0 : i32
    return %arg0, %c0_i32 : i32, i32
  }
  func.func @transform_2(%arg0: i32) -> (i32, i32, i32) {
    %c0_i32 = arith.constant 0 : i32
    %c0_i32_0 = arith.constant 0 : i32
    %c0_i32_1 = arith.constant 0 : i32
    return %arg0, %c0_i32, %c0_i32_0 : i32, i32, i32
  }
  func.func @transform_3(%arg0: i32) -> (i32, i32, i32) {
    %c0_i32 = arith.constant 0 : i32
    %c0_i32_0 = arith.constant 0 : i32
    %c0_i32_1 = arith.constant 0 : i32
    return %arg0, %c0_i32, %c0_i32_0 : i32, i32, i32
  }
}

</mosaic_0001>

<llo_original>
// kernel: tpu_custom_call.1
$region0: #{tpu_custom_call.1}
  #allocation0 [shape = 'u32[]', space=smem, size = 0x4, offset = 0x4, fixed_abs, tag = 'smem constant byte address 0x4 - core index']
  #allocation1 [shape = 'u32[144,128]{1,0:T(1,128)}', space=vmem, size = 0x12000, scoped, tag = 'internal scratch']
  %s0 = inlined_call_operand.vmem [shape: f32[16,128], index: 0, kind: input, shape index: {}]
  %s1 = inlined_call_operand.vmem [shape: s32[16,1], index: 1, kind: input, shape index: {}]
  %s2 = inlined_call_operand.hbm [shape: f32[1,1,1], index: 2, kind: output, shape index: {0}]
  %s3 = inlined_call_operand.hbm [shape: f32[1,1,1], index: 3, kind: output, shape index: {1}]
  %4 = xla_tuple %s2, %s3
  %s5 = sld [smem:[#allocation0]]
  $region26: #{tpu_custom_call.1} parent=0
    _
  %s7 = ssub.s32 1, %s5
  %s8 = scalar_select 0, %s7, %s5
  $region1: #{tpu_custom_call.1} parent=0
    #allocation2 [shape = 'u8[512]{0}', space=vmem, size = 0x400, scoped, tag = 'output window, operand 0, single buffered']
    #allocation3 [shape = 's32[1]{0}', space=sflag, size = 0x4, scoped, tag = 'scoped memory for tpu_custom_call.1']
    #allocation4 [shape = 'u8[512]{0}', space=vmem, size = 0x400, scoped, tag = 'output window, operand 1, single buffered']
    #allocation5 [shape = 's32[1]{0}', space=sflag, size = 0x4, scoped, tag = 'scoped memory for tpu_custom_call.1']
    %9 = vsyncpa [#allocation3], 0
    %10 = vsyncpa [#allocation5], 0
    // Predicated region
    $region2: #{tpu_custom_call.1} parent=1 // pred_check
      _
    $region3: #{tpu_custom_call.1} parent=1 // pred_check_branch
      %12 = sbr.rel (0) target = $region5
    $region4: #{tpu_custom_call.1} parent=1 // pred_region
      _
    $region5: #{tpu_custom_call.1} parent=1 // pred_fallthru
      _
    // Predicated region
    $region6: #{tpu_custom_call.1} parent=1 // pred_check
      _
    $region7: #{tpu_custom_call.1} parent=1 // pred_check_branch
      %14 = sbr.rel (0) target = $region9
    $region8: #{tpu_custom_call.1} parent=1 // pred_region
      _
    $region9: #{tpu_custom_call.1} parent=1 // pred_fallthru
      _
    %v15 = vld [vmem:[%s0] sm:$0xff]
    %v16 = vld [vmem:[%s0 + $0x8] sm:$0xff]
    %v17 = vld [vmem:[%s1] sm:$0xff]
    %v18 = vld [vmem:[%s1 + $0x8] sm:$0xff]
    %s19 = smul.u32 0, 16
    %v20 = vlaneseq
    %v21 = vshrl.u32 %v20, 7
    %v22 = vadd.s32 %v21, 8
    %v23 = vstv %s19
    %v24 = vadd.s32 %v23, %v21
    %v25 = vadd.s32 %v23, %v22
    %vm26 = vcmp.lt.s32.totalorder %v24, 16
    %vm27 = vcmp.lt.s32.totalorder %v25, 16
    %vm28 = vcmp.ge.s32.totalorder %v17, 0
    %vm29 = vcmp.ge.s32.totalorder %v18, 0
    %vm30 = vmand %vm26, %vm28
    %vm31 = vmand %vm27, %vm29
    %vm32 = vcmp.lt.s32.totalorder %v17, 128
    %vm33 = vcmp.lt.s32.totalorder %v18, 128
    %vm34 = vmand %vm30, %vm32
    %vm35 = vmand %vm31, %vm33
    %36 = vmax.xlane.f32.xlu0 %v15
    %v37 = vpop.xlane.xlu0 %36
    %38 = vmax.xlane.f32.xlu0 %v16
    %v39 = vpop.xlane.xlu0 %38
    %v40 = vsub.f32 %v15, %v37
    %v41 = vsub.f32 %v16, %v39
    %v42 = vmul.f32 %v40, 1.442695
    %v43 = vpow.pop %v42
    %v44 = vmul.f32 %v41, 1.442695
    %v45 = vpow.pop %v44
    %46 = vadd.xlane.f32.xlu0 %v43
    %v47 = vpop.xlane.xlu0 %46
    %48 = vadd.xlane.f32.xlu0 %v45
    %v49 = vpop.xlane.xlu0 %48
    %v50 = vlog2.pop %v47
    %v51 = vmul.f32 %v50, 0.6931472
    %v52 = vlog2.pop %v49
    %v53 = vmul.f32 %v52, 0.6931472
    %v54 = vadd.f32 %v51, %v37
    %v55 = vadd.f32 %v53, %v39
    %v56 = vlaneseq
    %v57 = vand.u32 %v56, 127
    %58 = vset.pattern.permute.xlu0 0
    %59 = vperm.xlu0 %58, %v17
    %v60 = vpop.permute.xlu0 %59
    %61 = vset.pattern.permute.xlu0 0
    %62 = vperm.xlu0 %61, %v18
    %v63 = vpop.permute.xlu0 %62
    %vm64 = vcmp.eq.s32.totalorder %v57, %v60
    %vm65 = vcmp.eq.s32.totalorder %v57, %v63
    %v66 = vsel %vm64, %v15, 0.0
    %v67 = vsel %vm65, %v16, 0.0
    %68 = vadd.xlane.f32.xlu0 %v66
    %v69 = vpop.xlane.xlu0 %68
    %70 = vadd.xlane.f32.xlu0 %v67
    %v71 = vpop.xlane.xlu0 %70
    %v72 = vsub.f32 %v69, %v54
    %v73 = vsub.f32 %v71, %v55
    %v74 = vmul.f32 %v72, 1.442695
    %v75 = vpow.pop %v74
    %v76 = vmul.f32 %v73, 1.442695
    %v77 = vpow.pop %v76
    %v78 = vsub.f32 1.0, %v75
    %v79 = vsub.f32 1.0, %v77
    %v80 = vmax.f32 %v78, 0.0
    %v81 = vmax.f32 %v79, 0.0
    %v82 = vmul.f32 %v80, %v80
    %v83 = vmul.f32 %v81, %v81
    %v84 = vmul.f32 %v82, %v72
    %v85 = vmul.f32 %v83, %v73
    %v86 = vsel %vm34, %v84, 0.0
    %v87 = vsel %vm35, %v85, 0.0
    %vm88 = vcmask 7168
    %v89 = vsel %vm88, %v86, 0.0
    %v90 = vsel %vm88, %v87, 0.0
    %v91 = vadd.f32 %v89, %v90
    %v92 = vrot.slane %v91, 4
    %v93 = vadd.f32 %v91, %v92
    %v94 = vrot.slane %v93, 2
    %v95 = vadd.f32 %v93, %v94
    %v96 = vrot.slane %v95, 1
    %v97 = vadd.f32 %v95, %v96
    %vm98 = vcmask 0
    %99 = vst.msk [vmem:[#allocation2] sm:$0x1] %vm98, %v97
    %v100 = vsel %vm34, 1, 0
    %v101 = vsel %vm35, 1, 0
    %v102 = vcvt.s32.f32 %v100
    %v103 = vcvt.s32.f32 %v101
    %v104 = vsel %vm88, %v102, 0.0
    %v105 = vsel %vm88, %v103, 0.0
    %v106 = vadd.f32 %v104, %v105
    %v107 = vrot.slane %v106, 4
    %v108 = vadd.f32 %v106, %v107
    %v109 = vrot.slane %v108, 2
    %v110 = vadd.f32 %v108, %v109
    %v111 = vrot.slane %v110, 1
    %v112 = vadd.f32 %v110, %v111
    %113 = vst.msk [vmem:[#allocation4] sm:$0x1] %vm98, %v112
    // Predicated region
    $region10: #{tpu_custom_call.1} parent=1 // pred_check
      _
    $region11: #{tpu_custom_call.1} parent=1 // pred_check_branch
      %115 = sbr.rel (0) target = $region13
    $region12: #{tpu_custom_call.1} parent=1 // pred_region
      %s117 = ssub.s32 16, 16
      %118 = vsyncadd [#allocation3], %s117
      %s120 = sshll.u32 [#allocation2], 4
      %s121 = int_to_ptr.vmem [resolvable:$true] %s120
      %123 = dma.vmem_to_hbm [thread:$0]  %s121, 16, %s2, [#allocation3]
    $region13: #{tpu_custom_call.1} parent=1 // pred_fallthru
      _
    // Predicated region
    $region14: #{tpu_custom_call.1} parent=1 // pred_check
      _
    $region15: #{tpu_custom_call.1} parent=1 // pred_check_branch
      %125 = sbr.rel (0) target = $region17
    $region16: #{tpu_custom_call.1} parent=1 // pred_region
      %s127 = ssub.s32 16, 16
      %128 = vsyncadd [#allocation5], %s127
      %s130 = sshll.u32 [#allocation4], 4
      %s131 = int_to_ptr.vmem [resolvable:$true] %s130
      %133 = dma.vmem_to_hbm [thread:$0]  %s131, 16, %s3, [#allocation5]
    $region17: #{tpu_custom_call.1} parent=1 // pred_fallthru
      _
    // Predicated region
    $region18: #{tpu_custom_call.1} parent=1 // pred_check
      _
    $region19: #{tpu_custom_call.1} parent=1 // pred_check_branch
      %135 = sbr.rel (0) target = $region21
    $region20: #{tpu_custom_call.1} parent=1 // pred_region
      %136 = dma.done [#allocation3], 16
    $region21: #{tpu_custom_call.1} parent=1 // pred_fallthru
      _
    // Predicated region
    $region22: #{tpu_custom_call.1} parent=1 // pred_check
      _
    $region23: #{tpu_custom_call.1} parent=1 // pred_check_branch
      %138 = sbr.rel (0) target = $region25
    $region24: #{tpu_custom_call.1} parent=1 // pred_region
      %139 = dma.done [#allocation5], 16
    $region25: #{tpu_custom_call.1} parent=1 // pred_fallthru
      _
    %140 = vsyncpa [#allocation3], 1
    %141 = vsyncpa [#allocation5], 1

</llo_original>
